<compile_context>
chip_gen: v7x
topology: tpu7x:2x2x1
jax: 0.10.0
libtpu: 0.0.40
codegen_flags: <defaults>
</compile_context>

<pallas_src>
import jax
import jax.numpy as jnp
from jax.experimental import pallas as pl
from jax.experimental.pallas import tpu as pltpu  # noqa: F401  (TPU backend assumed)


def _feature_converter_kernel(
    chroma_ref,   # (chroma_dim, K)
    dyn_ref,      # (1, K)
    plp_ref,      # (1, K)
    wc_ref,       # (K, N)
    wd_ref,       # (K, N)
    wr_ref,       # (K, N)
    bc_ref,       # (1, N)
    bd_ref,       # (1, N)
    br_ref,       # (1, N)
    oc_ref,       # (chroma_dim, N)
    od_ref,       # (chroma_dim, N)
    op_ref,       # (chroma_dim, N)
):
    """All three MLPs (matmul + bias + ReLU) in one invocation, MXU f32-accum."""
    # Chroma MLP: full (chroma_dim, K) @ (K, N).
    oc_ref[...] = jnp.maximum(
        jnp.dot(chroma_ref[...], wc_ref[...], preferred_element_type=jnp.float32)
        + bc_ref[...],
        0.0,
    )

    # Dynamics MLP: M=1 matmul, broadcast the (1, N) row at the output store
    # (this is torch's .unsqueeze(0).expand(chroma_dim, -1)).
    d_row = jnp.maximum(
        jnp.dot(dyn_ref[...], wd_ref[...], preferred_element_type=jnp.float32)
        + bd_ref[...],
        0.0,
    )
    od_ref[...] = jnp.broadcast_to(d_row, od_ref.shape)

    # Rhythm (plp) MLP: same M=1 + broadcast-at-store.
    p_row = jnp.maximum(
        jnp.dot(plp_ref[...], wr_ref[...], preferred_element_type=jnp.float32)
        + br_ref[...],
        0.0,
    )
    op_ref[...] = jnp.broadcast_to(p_row, op_ref.shape)


def fused_feature_converter(chroma, dyn_row, plp_row, wc, wd, wr, bc, bd, br):
    """Single pallas_call, no grid: every operand is a full-array VMEM block."""
    chroma_dim, K = chroma.shape
    Kw, N = wc.shape
    assert K == Kw

    out_shape = (
        jax.ShapeDtypeStruct((chroma_dim, N), jnp.float32),
        jax.ShapeDtypeStruct((chroma_dim, N), jnp.float32),
        jax.ShapeDtypeStruct((chroma_dim, N), jnp.float32),
    )
    return pl.pallas_call(
        _feature_converter_kernel,
        out_shape=out_shape,
    )(chroma, dyn_row, plp_row, wc, wd, wr, bc, bd, br)


@jax.jit
def feature_converter_forward(params, chroma_one_hot, dynamics_db, plp):
    """Mirrors FeatureConverter.forward.

    chroma_one_hot: (chroma_dim, input_length)
    dynamics_db:    (input_length,)
    plp:            (input_length,)
    returns: three (chroma_dim, output_length) arrays.
    """
    K = chroma_one_hot.shape[1]
    # Metadata-only reshapes; no broadcast materialization in HBM.
    dyn_row = dynamics_db.reshape(1, K)
    plp_row = plp.reshape(1, K)

    return fused_feature_converter(
        chroma_one_hot,
        dyn_row,
        plp_row,
        params["w_chroma"],
        params["w_dynamics"],
        params["w_rhythm"],
        params["b_chroma"][None, :],
        params["b_dynamics"][None, :],
        params["b_rhythm"][None, :],
    )


def init_params(key, input_length, output_length):
    """Synthetic parameters. torch Linear weight is (N, K); stored pre-transposed
    as (K, N) per MLP so the kernel does x @ w directly."""
    keys = jax.random.split(key, 6)
    bound = 1.0 / jnp.sqrt(jnp.float32(input_length))

    def w(k):
        return jax.random.uniform(
            k, (input_length, output_length), jnp.float32, -bound, bound
        )

    def b(k):
        return jax.random.uniform(k, (output_length,), jnp.float32, -bound, bound)

    return {
        "w_chroma": w(keys[0]),
        "w_dynamics": w(keys[1]),
        "w_rhythm": w(keys[2]),
        "b_chroma": b(keys[3]),
        "b_dynamics": b(keys[4]),
        "b_rhythm": b(keys[5]),
    }


def _reference(params, chroma_one_hot, dynamics_db, plp, chroma_dim):
    def mlp(x, w, b):
        return jnp.maximum(x @ w + b, 0.0)

    N = params["b_chroma"].shape[-1]
    pc = mlp(chroma_one_hot, params["w_chroma"], params["b_chroma"])
    pd = jnp.broadcast_to(
        mlp(dynamics_db[None, :], params["w_dynamics"], params["b_dynamics"]),
        (chroma_dim, N),
    )
    pp = jnp.broadcast_to(
        mlp(plp[None, :], params["w_rhythm"], params["b_rhythm"]),
        (chroma_dim, N),
    )
    return pc, pd, pp


if __name__ == "__main__":
    # Small shapes consistent with (input_length, output_length, chroma_dim).
    input_length = 512
    output_length = 256
    chroma_dim = 12

    key = jax.random.PRNGKey(0)
    k_params, k_chroma, k_dyn, k_plp = jax.random.split(key, 4)

    params = init_params(k_params, input_length, output_length)
    chroma_one_hot = jax.random.uniform(
        k_chroma, (chroma_dim, input_length), jnp.float32
    )
    dynamics_db = jax.random.normal(k_dyn, (input_length,), jnp.float32)
    plp = jax.random.normal(k_plp, (input_length,), jnp.float32)

    outs = feature_converter_forward(params, chroma_one_hot, dynamics_db, plp)
    outs = jax.block_until_ready(outs)

    refs = _reference(params, chroma_one_hot, dynamics_db, plp, chroma_dim)
    for o, r in zip(outs, refs):
        assert o.shape == (chroma_dim, output_length)
        assert jnp.allclose(o, r, atol=1e-4, rtol=1e-4)

    print("KERNEL_OK")
</pallas_src>

<mosaic_0001>
module attributes {stable_mosaic.version = 11 : i64} {
  func.func @_feature_converter_kernel(%arg0: memref<12x512xf32, #tpu.memory_space<vmem>>, %arg1: memref<1x512xf32, #tpu.memory_space<vmem>>, %arg2: memref<1x512xf32, #tpu.memory_space<vmem>>, %arg3: memref<512x256xf32, #tpu.memory_space<vmem>>, %arg4: memref<512x256xf32, #tpu.memory_space<vmem>>, %arg5: memref<512x256xf32, #tpu.memory_space<vmem>>, %arg6: memref<1x256xf32, #tpu.memory_space<vmem>>, %arg7: memref<1x256xf32, #tpu.memory_space<vmem>>, %arg8: memref<1x256xf32, #tpu.memory_space<vmem>>, %arg9: memref<12x256xf32, #tpu.memory_space<vmem>>, %arg10: memref<12x256xf32, #tpu.memory_space<vmem>>, %arg11: memref<12x256xf32, #tpu.memory_space<vmem>>) attributes {dimension_semantics = [], scalar_prefetch = 0 : i64, scratch_operands = 0 : i64, tpu.core_type = #tpu.core_type<tc>} {
    %c0 = arith.constant 0 : index
    %c0_0 = arith.constant 0 : index
    %0 = vector.load %arg0[%c0, %c0_0] : memref<12x512xf32, #tpu.memory_space<vmem>>, vector<12x512xf32>
    %c0_1 = arith.constant 0 : index
    %c0_2 = arith.constant 0 : index
    %1 = vector.load %arg3[%c0_1, %c0_2] : memref<512x256xf32, #tpu.memory_space<vmem>>, vector<512x256xf32>
    %cst = arith.constant dense<0.000000e+00> : vector<12x256xf32>
    %2 = tpu.matmul %0, %1, %cst {dimension_numbers = #tpu.dot_dimension_numbers<[1], [0], [0], [1], [0, 0, 1, 1], [], []>} : vector<12x512xf32>, vector<512x256xf32>, vector<12x256xf32> -> vector<12x256xf32>
    %c0_3 = arith.constant 0 : index
    %c0_4 = arith.constant 0 : index
    %3 = vector.load %arg6[%c0_3, %c0_4] : memref<1x256xf32, #tpu.memory_space<vmem>>, vector<1x256xf32>
    %4 = vector.broadcast %3 : vector<1x256xf32> to vector<12x256xf32>
    %5 = arith.addf %2, %4 : vector<12x256xf32>
    %cst_5 = arith.constant 0.000000e+00 : f32
    %6 = vector.broadcast %cst_5 : f32 to vector<12x256xf32>
    %7 = arith.maximumf %5, %6 : vector<12x256xf32>
    %c0_6 = arith.constant 0 : index
    %c0_7 = arith.constant 0 : index
    %8 = vector.load %arg9[%c0_6, %c0_7] : memref<12x256xf32, #tpu.memory_space<vmem>>, vector<12x256xf32>
    tpu.vector_store %arg9[%c0_6, %c0_7], %7 {strides = array<i32>} : memref<12x256xf32, #tpu.memory_space<vmem>>, vector<12x256xf32>,
    %c0_8 = arith.constant 0 : index
    %c0_9 = arith.constant 0 : index
    %9 = vector.load %arg1[%c0_8, %c0_9] : memref<1x512xf32, #tpu.memory_space<vmem>>, vector<1x512xf32>
    %c0_10 = arith.constant 0 : index
    %c0_11 = arith.constant 0 : index
    %10 = vector.load %arg4[%c0_10, %c0_11] : memref<512x256xf32, #tpu.memory_space<vmem>>, vector<512x256xf32>
    %cst_12 = arith.constant dense<0.000000e+00> : vector<1x256xf32>
    %11 = tpu.matmul %9, %10, %cst_12 {dimension_numbers = #tpu.dot_dimension_numbers<[1], [0], [0], [1], [0, 0, 1, 1], [], []>} : vector<1x512xf32>, vector<512x256xf32>, vector<1x256xf32> -> vector<1x256xf32>
    %c0_13 = arith.constant 0 : index
    %c0_14 = arith.constant 0 : index
    %12 = vector.load %arg7[%c0_13, %c0_14] : memref<1x256xf32, #tpu.memory_space<vmem>>, vector<1x256xf32>
    %13 = arith.addf %11, %12 : vector<1x256xf32>
    %cst_15 = arith.constant 0.000000e+00 : f32
    %14 = vector.broadcast %cst_15 : f32 to vector<1x256xf32>
    %15 = arith.maximumf %13, %14 : vector<1x256xf32>
    %16 = vector.shape_cast %15 : vector<1x256xf32> to vector<1x256xf32>
    %17 = vector.broadcast %16 : vector<1x256xf32> to vector<12x256xf32>
    %c0_16 = arith.constant 0 : index
    %c0_17 = arith.constant 0 : index
    %18 = vector.load %arg10[%c0_16, %c0_17] : memref<12x256xf32, #tpu.memory_space<vmem>>, vector<12x256xf32>
    tpu.vector_store %arg10[%c0_16, %c0_17], %17 {strides = array<i32>} : memref<12x256xf32, #tpu.memory_space<vmem>>, vector<12x256xf32>,
    %c0_18 = arith.constant 0 : index
    %c0_19 = arith.constant 0 : index
    %19 = vector.load %arg2[%c0_18, %c0_19] : memref<1x512xf32, #tpu.memory_space<vmem>>, vector<1x512xf32>
    %c0_20 = arith.constant 0 : index
    %c0_21 = arith.constant 0 : index
    %20 = vector.load %arg5[%c0_20, %c0_21] : memref<512x256xf32, #tpu.memory_space<vmem>>, vector<512x256xf32>
    %cst_22 = arith.constant dense<0.000000e+00> : vector<1x256xf32>
    %21 = tpu.matmul %19, %20, %cst_22 {dimension_numbers = #tpu.dot_dimension_numbers<[1], [0], [0], [1], [0, 0, 1, 1], [], []>} : vector<1x512xf32>, vector<512x256xf32>, vector<1x256xf32> -> vector<1x256xf32>
    %c0_23 = arith.constant 0 : index
    %c0_24 = arith.constant 0 : index
    %22 = vector.load %arg8[%c0_23, %c0_24] : memref<1x256xf32, #tpu.memory_space<vmem>>, vector<1x256xf32>
    %23 = arith.addf %21, %22 : vector<1x256xf32>
    %cst_25 = arith.constant 0.000000e+00 : f32
    %24 = vector.broadcast %cst_25 : f32 to vector<1x256xf32>
    %25 = arith.maximumf %23, %24 : vector<1x256xf32>
    %26 = vector.shape_cast %25 : vector<1x256xf32> to vector<1x256xf32>
    %27 = vector.broadcast %26 : vector<1x256xf32> to vector<12x256xf32>
    %c0_26 = arith.constant 0 : index
    %c0_27 = arith.constant 0 : index
    %28 = vector.load %arg11[%c0_26, %c0_27] : memref<12x256xf32, #tpu.memory_space<vmem>>, vector<12x256xf32>
    tpu.vector_store %arg11[%c0_26, %c0_27], %27 {strides = array<i32>} : memref<12x256xf32, #tpu.memory_space<vmem>>, vector<12x256xf32>,
    return
  }
}

</mosaic_0001>

<llo_original>
// kernel: feature_converter_forward.1
$region0: #{feature_converter_forward.1}
  #allocation0 [shape = 'u32[]', space=smem, size = 0x4, offset = 0x4, fixed_abs, tag = 'smem constant byte address 0x4 - core index']
  #allocation1 [shape = 'u32[144,128]{1,0:T(1,128)}', space=vmem, size = 0x12000, scoped, tag = 'internal scratch']
  %s0 = inlined_call_operand.hbm [shape: f32[12,512], index: 0, kind: input, shape index: {}]
  %s1 = inlined_call_operand.vmem [shape: f32[1,512], index: 1, kind: input, shape index: {}]
  %s2 = inlined_call_operand.vmem [shape: f32[1,512], index: 2, kind: input, shape index: {}]
  %s3 = inlined_call_operand.hbm [shape: f32[512,256], index: 3, kind: input, shape index: {}]
  %s4 = inlined_call_operand.hbm [shape: f32[512,256], index: 4, kind: input, shape index: {}]
  %s5 = inlined_call_operand.hbm [shape: f32[512,256], index: 5, kind: input, shape index: {}]
  %s6 = inlined_call_operand.vmem [shape: f32[1,256], index: 6, kind: input, shape index: {}]
  %s7 = inlined_call_operand.vmem [shape: f32[1,256], index: 7, kind: input, shape index: {}]
  %s8 = inlined_call_operand.vmem [shape: f32[1,256], index: 8, kind: input, shape index: {}]
  %s9 = inlined_call_operand.hbm [shape: f32[12,256], index: 9, kind: output, shape index: {0}]
  %s10 = inlined_call_operand.hbm [shape: f32[12,256], index: 10, kind: output, shape index: {1}]
  %s11 = inlined_call_operand.hbm [shape: f32[12,256], index: 11, kind: output, shape index: {2}]
  %12 = xla_tuple %s9, %s10, %s11
  %s13 = sld [smem:[#allocation0]]
  $region78: #{feature_converter_forward.1} parent=0
    _
  %s15 = ssub.s32 1, %s13
  %s16 = scalar_select 0, %s15, %s13
  $region1: #{feature_converter_forward.1} parent=0
    #allocation2 [shape = 'u8[32768]{0}', space=vmem, size = 0x8000, scoped, tag = 'input window, operand 0, single buffered']
    #allocation3 [shape = 's32[1]{0}', space=sflag, size = 0x4, scoped, tag = 'scoped memory for feature_converter_forward.1']
    #allocation4 [shape = 's32[1]{0}', space=sflag, size = 0x4, scoped, tag = 'scoped memory for feature_converter_forward.1']
    #allocation5 [shape = 'u8[524288]{0}', space=vmem, size = 0x80000, scoped, tag = 'input window, operand 3, single buffered']
    #allocation6 [shape = 's32[1]{0}', space=sflag, size = 0x4, scoped, tag = 'scoped memory for feature_converter_forward.1']
    #allocation7 [shape = 'u8[524288]{0}', space=vmem, size = 0x80000, scoped, tag = 'input window, operand 4, single buffered']
    #allocation8 [shape = 'u8[524288]{0}', space=vmem, size = 0x80000, scoped, tag = 'input window, operand 5, single buffered']
    #allocation9 [shape = 's32[1]{0}', space=sflag, size = 0x4, scoped, tag = 'scoped memory for feature_converter_forward.1']
    #allocation10 [shape = 'u8[16384]{0}', space=vmem, size = 0x4000, scoped, tag = 'output window, operand 0, single buffered']
    #allocation11 [shape = 'u8[16384]{0}', space=vmem, size = 0x4000, scoped, tag = 'output window, operand 1, single buffered']
    #allocation12 [shape = 's32[1]{0}', space=sflag, size = 0x4, scoped, tag = 'scoped memory for feature_converter_forward.1']
    #allocation13 [shape = 'u8[16384]{0}', space=vmem, size = 0x4000, scoped, tag = 'output window, operand 2, single buffered']
    %17 = vsyncpa [#allocation3], 0
    %18 = vsyncpa [#allocation6], 0
    %19 = vsyncpa [#allocation9], 0
    %20 = vsyncpa [#allocation4], 0
    %21 = vsyncpa [#allocation12], 0
    // Predicated region
    $region2: #{feature_converter_forward.1} parent=1 // pred_check
      _
    $region3: #{feature_converter_forward.1} parent=1 // pred_check_branch
      %23 = sbr.rel (0) target = $region5
    $region4: #{feature_converter_forward.1} parent=1 // pred_region
      %s25 = ssub.s32 1024, 1024
      %26 = vsyncadd [#allocation3], %s25
      %s27 = sshll.u32 [#allocation2], 4
      %s28 = int_to_ptr.vmem [resolvable:$true] %s27
      %33 = dma.hbm_to_vmem [thread:$0]  %s0, 1024, %s28, [#allocation3], 512, 512, 32
    $region5: #{feature_converter_forward.1} parent=1 // pred_fallthru
      _
    // Predicated region
    $region6: #{feature_converter_forward.1} parent=1 // pred_check
      _
    $region7: #{feature_converter_forward.1} parent=1 // pred_check_branch
      %35 = sbr.rel (0) target = $region9
    $region8: #{feature_converter_forward.1} parent=1 // pred_region
      _
    $region9: #{feature_converter_forward.1} parent=1 // pred_fallthru
      _
    // Predicated region
    $region10: #{feature_converter_forward.1} parent=1 // pred_check
      _
    $region11: #{feature_converter_forward.1} parent=1 // pred_check_branch
      %37 = sbr.rel (0) target = $region13
    $region12: #{feature_converter_forward.1} parent=1 // pred_region
      _
    $region13: #{feature_converter_forward.1} parent=1 // pred_fallthru
      _
    // Predicated region
    $region14: #{feature_converter_forward.1} parent=1 // pred_check
      _
    $region15: #{feature_converter_forward.1} parent=1 // pred_check_branch
      %39 = sbr.rel (0) target = $region17
    $region16: #{feature_converter_forward.1} parent=1 // pred_region
      %s41 = ssub.s32 16384, 16384
      %42 = vsyncadd [#allocation6], %s41
      %s43 = sshll.u32 [#allocation5], 4
      %s44 = int_to_ptr.vmem [resolvable:$true] %s43
      %49 = dma.hbm_to_vmem [thread:$0]  %s3, 16384, %s44, [#allocation6], 256, 256, 16
    $region17: #{feature_converter_forward.1} parent=1 // pred_fallthru
      _
    // Predicated region
    $region18: #{feature_converter_forward.1} parent=1 // pred_check
      _
    $region19: #{feature_converter_forward.1} parent=1 // pred_check_branch
      %51 = sbr.rel (0) target = $region21
    $region20: #{feature_converter_forward.1} parent=1 // pred_region
      %s53 = ssub.s32 16384, 16384
      %54 = vsyncadd [#allocation6], %s53
      %s55 = sshll.u32 [#allocation7], 4
      %s56 = int_to_ptr.vmem [resolvable:$true] %s55
      %61 = dma.hbm_to_vmem [thread:$0]  %s4, 16384, %s56, [#allocation6], 256, 256, 16
    $region21: #{feature_converter_forward.1} parent=1 // pred_fallthru
      _
    // Predicated region
    $region22: #{feature_converter_forward.1} parent=1 // pred_check
      _
    $region23: #{feature_converter_forward.1} parent=1 // pred_check_branch
      %63 = sbr.rel (0) target = $region25
    $region24: #{feature_converter_forward.1} parent=1 // pred_region
      %s65 = ssub.s32 16384, 16384
      %66 = vsyncadd [#allocation9], %s65
      %s67 = sshll.u32 [#allocation8], 4
      %s68 = int_to_ptr.vmem [resolvable:$true] %s67
      %73 = dma.hbm_to_vmem [thread:$0]  %s5, 16384, %s68, [#allocation9], 256, 256, 16
    $region25: #{feature_converter_forward.1} parent=1 // pred_fallthru
      _
    // Predicated region
    $region26: #{feature_converter_forward.1} parent=1 // pred_check
      _
    $region27: #{feature_converter_forward.1} parent=1 // pred_check_branch
      %75 = sbr.rel (0) target = $region29
    $region28: #{feature_converter_forward.1} parent=1 // pred_region
      _
    $region29: #{feature_converter_forward.1} parent=1 // pred_fallthru
      _
    // Predicated region
    $region30: #{feature_converter_forward.1} parent=1 // pred_check
      _
    $region31: #{feature_converter_forward.1} parent=1 // pred_check_branch
      %77 = sbr.rel (0) target = $region33
    $region32: #{feature_converter_forward.1} parent=1 // pred_region
      _
    $region33: #{feature_converter_forward.1} parent=1 // pred_fallthru
      _
    // Predicated region
    $region34: #{feature_converter_forward.1} parent=1 // pred_check
      _
    $region35: #{feature_converter_forward.1} parent=1 // pred_check_branch
      %79 = sbr.rel (0) target = $region37
    $region36: #{feature_converter_forward.1} parent=1 // pred_region
      _
    $region37: #{feature_converter_forward.1} parent=1 // pred_fallthru
      _
    // Predicated region
    $region38: #{feature_converter_forward.1} parent=1 // pred_check
      _
    $region39: #{feature_converter_forward.1} parent=1 // pred_check_branch
      %81 = sbr.rel (0) target = $region41
    $region40: #{feature_converter_forward.1} parent=1 // pred_region
      %82 = dma.done [#allocation3], 1024
    $region41: #{feature_converter_forward.1} parent=1 // pred_fallthru
      _
    // Predicated region
    $region42: #{feature_converter_forward.1} parent=1 // pred_check
      _
    $region43: #{feature_converter_forward.1} parent=1 // pred_check_branch
      %84 = sbr.rel (0) target = $region45
    $region44: #{feature_converter_forward.1} parent=1 // pred_region
      %85 = dma.done [#allocation6], 16384
    $region45: #{feature_converter_forward.1} parent=1 // pred_fallthru
      _
    // Predicated region
    $region46: #{feature_converter_forward.1} parent=1 // pred_check
      _
    $region47: #{feature_converter_forward.1} parent=1 // pred_check_branch
      %87 = sbr.rel (0) target = $region49
    $region48: #{feature_converter_forward.1} parent=1 // pred_region
      %88 = dma.done [#allocation6], 16384
    $region49: #{feature_converter_forward.1} parent=1 // pred_fallthru
      _
    // Predicated region
    $region50: #{feature_converter_forward.1} parent=1 // pred_check
      _
    $region51: #{feature_converter_forward.1} parent=1 // pred_check_branch
      %90 = sbr.rel (0) target = $region53
    $region52: #{feature_converter_forward.1} parent=1 // pred_region
      %91 = dma.done [#allocation9], 16384
    $region53: #{feature_converter_forward.1} parent=1 // pred_fallthru
      _
    %v92 = vld [vmem:[#allocation2] sm:$0xff]
    %v93 = vld [vmem:[#allocation2 + $0x8] sm:$0xff]
    %v94 = vld [vmem:[#allocation2 + $0x10] sm:$0xff]
    %v95 = vld [vmem:[#allocation2 + $0x18] sm:$0xff]
    %v96 = vld [vmem:[#allocation2 + $0x20] sm:$0xf]
    %v97 = vld [vmem:[#allocation2 + $0x28] sm:$0xf]
    %v98 = vld [vmem:[#allocation2 + $0x30] sm:$0xf]
    %v99 = vld [vmem:[#allocation2 + $0x38] sm:$0xf]
    %v100 = vld [vmem:[#allocation5] sm:$0xff]
    %v101 = vld [vmem:[#allocation5 + $0x8] sm:$0xff]
    %v102 = vld [vmem:[#allocation5 + $0x10] sm:$0xff]
    %v103 = vld [vmem:[#allocation5 + $0x18] sm:$0xff]
    %v104 = vld [vmem:[#allocation5 + $0x20] sm:$0xff]
    %v105 = vld [vmem:[#allocation5 + $0x28] sm:$0xff]
    %v106 = vld [vmem:[#allocation5 + $0x30] sm:$0xff]
    %v107 = vld [vmem:[#allocation5 + $0x38] sm:$0xff]
    %v108 = vld [vmem:[#allocation5 + $0x40] sm:$0xff]
    %v109 = vld [vmem:[#allocation5 + $0x48] sm:$0xff]
    %v110 = vld [vmem:[#allocation5 + $0x50] sm:$0xff]
    %v111 = vld [vmem:[#allocation5 + $0x58] sm:$0xff]
    %v112 = vld [vmem:[#allocation5 + $0x60] sm:$0xff]
    %v113 = vld [vmem:[#allocation5 + $0x68] sm:$0xff]
    %v114 = vld [vmem:[#allocation5 + $0x70] sm:$0xff]
    %v115 = vld [vmem:[#allocation5 + $0x78] sm:$0xff]
    %v116 = vld [vmem:[#allocation5 + $0x80] sm:$0xff]
    %v117 = vld [vmem:[#allocation5 + $0x88] sm:$0xff]
    %v118 = vld [vmem:[#allocation5 + $0x90] sm:$0xff]
    %v119 = vld [vmem:[#allocation5 + $0x98] sm:$0xff]
    %v120 = vld [vmem:[#allocation5 + $0xa0] sm:$0xff]
    %v121 = vld [vmem:[#allocation5 + $0xa8] sm:$0xff]
    %v122 = vld [vmem:[#allocation5 + $0xb0] sm:$0xff]
    %v123 = vld [vmem:[#allocation5 + $0xb8] sm:$0xff]
    %v124 = vld [vmem:[#allocation5 + $0xc0] sm:$0xff]
    %v125 = vld [vmem:[#allocation5 + $0xc8] sm:$0xff]
    %v126 = vld [vmem:[#allocation5 + $0xd0] sm:$0xff]
    %v127 = vld [vmem:[#allocation5 + $0xd8] sm:$0xff]
    %v128 = vld [vmem:[#allocation5 + $0xe0] sm:$0xff]
    %v129 = vld [vmem:[#allocation5 + $0xe8] sm:$0xff]
    %v130 = vld [vmem:[#allocation5 + $0xf0] sm:$0xff]
    %v131 = vld [vmem:[#allocation5 + $0xf8] sm:$0xff]
    %v132 = vld [vmem:[#allocation5 + $0x100] sm:$0xff]
    %v133 = vld [vmem:[#allocation5 + $0x108] sm:$0xff]
    %v134 = vld [vmem:[#allocation5 + $0x110] sm:$0xff]
    %v135 = vld [vmem:[#allocation5 + $0x118] sm:$0xff]
    %v136 = vld [vmem:[#allocation5 + $0x120] sm:$0xff]
    %v137 = vld [vmem:[#allocation5 + $0x128] sm:$0xff]
    %v138 = vld [vmem:[#allocation5 + $0x130] sm:$0xff]
    %v139 = vld [vmem:[#allocation5 + $0x138] sm:$0xff]
    %v140 = vld [vmem:[#allocation5 + $0x140] sm:$0xff]
    %v141 = vld [vmem:[#allocation5 + $0x148] sm:$0xff]
    %v142 = vld [vmem:[#allocation5 + $0x150] sm:$0xff]
    %v143 = vld [vmem:[#allocation5 + $0x158] sm:$0xff]
    %v144 = vld [vmem:[#allocation5 + $0x160] sm:$0xff]
    %v145 = vld [vmem:[#allocation5 + $0x168] sm:$0xff]
    %v146 = vld [vmem:[#allocation5 + $0x170] sm:$0xff]
    %v147 = vld [vmem:[#allocation5 + $0x178] sm:$0xff]
    %v148 = vld [vmem:[#allocation5 + $0x180] sm:$0xff]
    %v149 = vld [vmem:[#allocation5 + $0x188] sm:$0xff]
    %v150 = vld [vmem:[#allocation5 + $0x190] sm:$0xff]
    %v151 = vld [vmem:[#allocation5 + $0x198] sm:$0xff]
    %v152 = vld [vmem:[#allocation5 + $0x1a0] sm:$0xff]
    %v153 = vld [vmem:[#allocation5 + $0x1a8] sm:$0xff]
    %v154 = vld [vmem:[#allocation5 + $0x1b0] sm:$0xff]
    %v155 = vld [vmem:[#allocation5 + $0x1b8] sm:$0xff]
    %v156 = vld [vmem:[#allocation5 + $0x1c0] sm:$0xff]
    %v157 = vld [vmem:[#allocation5 + $0x1c8] sm:$0xff]
    %v158 = vld [vmem:[#allocation5 + $0x1d0] sm:$0xff]
    %v159 = vld [vmem:[#allocation5 + $0x1d8] sm:$0xff]
    %v160 = vld [vmem:[#allocation5 + $0x1e0] sm:$0xff]
    %v161 = vld [vmem:[#allocation5 + $0x1e8] sm:$0xff]
    %v162 = vld [vmem:[#allocation5 + $0x1f0] sm:$0xff]
    %v163 = vld [vmem:[#allocation5 + $0x1f8] sm:$0xff]
    %v164 = vld [vmem:[#allocation5 + $0x200] sm:$0xff]
    %v165 = vld [vmem:[#allocation5 + $0x208] sm:$0xff]
    %v166 = vld [vmem:[#allocation5 + $0x210] sm:$0xff]
    %v167 = vld [vmem:[#allocation5 + $0x218] sm:$0xff]
    %v168 = vld [vmem:[#allocation5 + $0x220] sm:$0xff]
    %v169 = vld [vmem:[#allocation5 + $0x228] sm:$0xff]
    %v170 = vld [vmem:[#allocation5 + $0x230] sm:$0xff]
    %v171 = vld [vmem:[#allocation5 + $0x238] sm:$0xff]
    %v172 = vld [vmem:[#allocation5 + $0x240] sm:$0xff]
    %v173 = vld [vmem:[#allocation5 + $0x248] sm:$0xff]
    %v174 = vld [vmem:[#allocation5 + $0x250] sm:$0xff]
    %v175 = vld [vmem:[#allocation5 + $0x258] sm:$0xff]
    %v176 = vld [vmem:[#allocation5 + $0x260] sm:$0xff]
    %v177 = vld [vmem:[#allocation5 + $0x268] sm:$0xff]
    %v178 = vld [vmem:[#allocation5 + $0x270] sm:$0xff]
    %v179 = vld [vmem:[#allocation5 + $0x278] sm:$0xff]
    %v180 = vld [vmem:[#allocation5 + $0x280] sm:$0xff]
    %v181 = vld [vmem:[#allocation5 + $0x288] sm:$0xff]
    %v182 = vld [vmem:[#allocation5 + $0x290] sm:$0xff]
    %v183 = vld [vmem:[#allocation5 + $0x298] sm:$0xff]
    %v184 = vld [vmem:[#allocation5 + $0x2a0] sm:$0xff]
    %v185 = vld [vmem:[#allocation5 + $0x2a8] sm:$0xff]
    %v186 = vld [vmem:[#allocation5 + $0x2b0] sm:$0xff]
    %v187 = vld [vmem:[#allocation5 + $0x2b8] sm:$0xff]
    %v188 = vld [vmem:[#allocation5 + $0x2c0] sm:$0xff]
    %v189 = vld [vmem:[#allocation5 + $0x2c8] sm:$0xff]
    %v190 = vld [vmem:[#allocation5 + $0x2d0] sm:$0xff]
    %v191 = vld [vmem:[#allocation5 + $0x2d8] sm:$0xff]
    %v192 = vld [vmem:[#allocation5 + $0x2e0] sm:$0xff]
    %v193 = vld [vmem:[#allocation5 + $0x2e8] sm:$0xff]
    %v194 = vld [vmem:[#allocation5 + $0x2f0] sm:$0xff]
    %v195 = vld [vmem:[#allocation5 + $0x2f8] sm:$0xff]
    %v196 = vld [vmem:[#allocation5 + $0x300] sm:$0xff]
    %v197 = vld [vmem:[#allocation5 + $0x308] sm:$0xff]
    %v198 = vld [vmem:[#allocation5 + $0x310] sm:$0xff]
    %v199 = vld [vmem:[#allocation5 + $0x318] sm:$0xff]
    %v200 = vld [vmem:[#allocation5 + $0x320] sm:$0xff]
    %v201 = vld [vmem:[#allocation5 + $0x328] sm:$0xff]
    %v202 = vld [vmem:[#allocation5 + $0x330] sm:$0xff]
    %v203 = vld [vmem:[#allocation5 + $0x338] sm:$0xff]
    %v204 = vld [vmem:[#allocation5 + $0x340] sm:$0xff]
    %v205 = vld [vmem:[#allocation5 + $0x348] sm:$0xff]
    %v206 = vld [vmem:[#allocation5 + $0x350] sm:$0xff]
    %v207 = vld [vmem:[#allocation5 + $0x358] sm:$0xff]
    %v208 = vld [vmem:[#allocation5 + $0x360] sm:$0xff]
    %v209 = vld [vmem:[#allocation5 + $0x368] sm:$0xff]
    %v210 = vld [vmem:[#allocation5 + $0x370] sm:$0xff]
    %v211 = vld [vmem:[#allocation5 + $0x378] sm:$0xff]
    %v212 = vld [vmem:[#allocation5 + $0x380] sm:$0xff]
    %v213 = vld [vmem:[#allocation5 + $0x388] sm:$0xff]
    %v214 = vld [vmem:[#allocation5 + $0x390] sm:$0xff]
    %v215 = vld [vmem:[#allocation5 + $0x398] sm:$0xff]
    %v216 = vld [vmem:[#allocation5 + $0x3a0] sm:$0xff]
    %v217 = vld [vmem:[#allocation5 + $0x3a8] sm:$0xff]
    %v218 = vld [vmem:[#allocation5 + $0x3b0] sm:$0xff]
    %v219 = vld [vmem:[#allocation5 + $0x3b8] sm:$0xff]
    %v220 = vld [vmem:[#allocation5 + $0x3c0] sm:$0xff]
    %v221 = vld [vmem:[#allocation5 + $0x3c8] sm:$0xff]
    %v222 = vld [vmem:[#allocation5 + $0x3d0] sm:$0xff]
    %v223 = vld [vmem:[#allocation5 + $0x3d8] sm:$0xff]
    %v224 = vld [vmem:[#allocation5 + $0x3e0] sm:$0xff]
    %v225 = vld [vmem:[#allocation5 + $0x3e8] sm:$0xff]
    %v226 = vld [vmem:[#allocation5 + $0x3f0] sm:$0xff]
    %v227 = vld [vmem:[#allocation5 + $0x3f8] sm:$0xff]
    %v228 = vld [vmem:[%s6] sm:$0x3]
    %v230 = vlaneseq
    %v231 = vshrl.u32 %v230, 7
    %v232 = vsub.s32 0, %v231
    %v233 = vrot.slane %v228, %v232
    %v234 = vlaneseq
    %v235 = vshrl.u32 %v234, 7
    %v236 = vsub.s32 1, %v235
    %v237 = vrot.slane %v228, %v236
    %240 = vmatprep.subr.mxu0 %v101
    %241 = vmatpush1.msra.mxu0 %v100
    %242 = vmatprep.subr.mxu0 %v103
    %243 = vmatpush1.msra.mxu0 %v102
    %244 = vmatprep.subr.mxu0 %v105
    %245 = vmatpush1.msra.mxu0 %v104
    %246 = vmatprep.subr.mxu0 %v107
    %247 = vmatpush1.msra.mxu0 %v106
    %248 = vmatprep.subr.mxu0 %v109
    %249 = vmatpush1.msra.mxu0 %v108
    %250 = vmatprep.subr.mxu0 %v111
    %251 = vmatpush1.msra.mxu0 %v110
    %252 = vmatprep.subr.mxu0 %v113
    %253 = vmatpush1.msra.mxu0 %v112
    %254 = vmatprep.subr.mxu0 %v115
    %255 = vmatpush1.msra.mxu0 %v114
    %256 = vmatprep.subr.mxu0 %v117
    %257 = vmatpush1.msra.mxu0 %v116
    %258 = vmatprep.subr.mxu0 %v119
    %259 = vmatpush1.msra.mxu0 %v118
    %260 = vmatprep.subr.mxu0 %v121
    %261 = vmatpush1.msra.mxu0 %v120
    %262 = vmatprep.subr.mxu0 %v123
    %263 = vmatpush1.msra.mxu0 %v122
    %264 = vmatprep.subr.mxu0 %v125
    %265 = vmatpush1.msra.mxu0 %v124
    %266 = vmatprep.subr.mxu0 %v127
    %267 = vmatpush1.msra.mxu0 %v126
    %268 = vmatprep.subr.mxu0 %v129
    %269 = vmatpush1.msra.mxu0 %v128
    %270 = vmatprep.subr.mxu0 %v131
    %271 = vmatpush1.msra.mxu0 %v130
    %272 = vmatprep.subr.mxu0 %v133
    %273 = vmatpush1.msra.mxu0 %v132
    %274 = vmatprep.subr.mxu0 %v135
    %275 = vmatpush1.msra.mxu0 %v134
    %276 = vmatprep.subr.mxu0 %v137
    %277 = vmatpush1.msra.mxu0 %v136
    %278 = vmatprep.subr.mxu0 %v139
    %279 = vmatpush1.msra.mxu0 %v138
    %280 = vmatprep.subr.mxu0 %v141
    %281 = vmatpush1.msra.mxu0 %v140
    %282 = vmatprep.subr.mxu0 %v143
    %283 = vmatpush1.msra.mxu0 %v142
    %284 = vmatprep.subr.mxu0 %v145
    %285 = vmatpush1.msra.mxu0 %v144
    %286 = vmatprep.subr.mxu0 %v147
    %287 = vmatpush1.msra.mxu0 %v146
    %288 = vmatprep.subr.mxu0 %v149
    %289 = vmatpush1.msra.mxu0 %v148
    %290 = vmatprep.subr.mxu0 %v151
    %291 = vmatpush1.msra.mxu0 %v150
    %292 = vmatprep.subr.mxu0 %v153
    %293 = vmatpush1.msra.mxu0 %v152
    %294 = vmatprep.subr.mxu0 %v155
    %295 = vmatpush1.msra.mxu0 %v154
    %296 = vmatprep.subr.mxu0 %v157
    %297 = vmatpush1.msra.mxu0 %v156
    %298 = vmatprep.subr.mxu0 %v159
    %299 = vmatpush1.msra.mxu0 %v158
    %300 = vmatprep.subr.mxu0 %v161
    %301 = vmatpush1.msra.mxu0 %v160
    %302 = vmatprep.subr.mxu0 %v163
    %303 = vmatpush1.msra.mxu0 %v162
    %304 = vmatprep.mubr.f32.mxu0 %v93
    %305 = vmatmul.mubr.f32.gmra.mrb[0].mxu0 %v92
    %v306 = vpop.f32.mrb[0].mxu0
    %v307 = vadd.f32 %v233, %v306
    %v308 = vpop.f32.mrb[0].mxu0
    %v309 = vadd.f32 %v237, %v308
    %310 = vmatprep.mubr.f32.mxu0 %v97
    %311 = vmatmul.mubr.f32.gmra.mrb[0].mxu0 %v96
    %v312 = vpop.f32.mrb[0].mxu0
    %v313 = vadd.f32 %v233, %v312
    %v314 = vpop.f32.mrb[0].mxu0
    %v315 = vadd.f32 %v237, %v314
    %316 = vdwg.mxu0
    %317 = vmatprep.subr.mxu0 %v165
    %318 = vmatpush1.msra.mxu0 %v164
    %319 = vmatprep.subr.mxu0 %v167
    %320 = vmatpush1.msra.mxu0 %v166
    %321 = vmatprep.subr.mxu0 %v169
    %322 = vmatpush1.msra.mxu0 %v168
    %323 = vmatprep.subr.mxu0 %v171
    %324 = vmatpush1.msra.mxu0 %v170
    %325 = vmatprep.subr.mxu0 %v173
    %326 = vmatpush1.msra.mxu0 %v172
    %327 = vmatprep.subr.mxu0 %v175
    %328 = vmatpush1.msra.mxu0 %v174
    %329 = vmatprep.subr.mxu0 %v177
    %330 = vmatpush1.msra.mxu0 %v176
    %331 = vmatprep.subr.mxu0 %v179
    %332 = vmatpush1.msra.mxu0 %v178
    %333 = vmatprep.subr.mxu0 %v181
    %334 = vmatpush1.msra.mxu0 %v180
    %335 = vmatprep.subr.mxu0 %v183
    %336 = vmatpush1.msra.mxu0 %v182
    %337 = vmatprep.subr.mxu0 %v185
    %338 = vmatpush1.msra.mxu0 %v184
    %339 = vmatprep.subr.mxu0 %v187
    %340 = vmatpush1.msra.mxu0 %v186
    %341 = vmatprep.subr.mxu0 %v189
    %342 = vmatpush1.msra.mxu0 %v188
    %343 = vmatprep.subr.mxu0 %v191
    %344 = vmatpush1.msra.mxu0 %v190
    %345 = vmatprep.subr.mxu0 %v193
    %346 = vmatpush1.msra.mxu0 %v192
    %347 = vmatprep.subr.mxu0 %v195
    %348 = vmatpush1.msra.mxu0 %v194
    %349 = vmatprep.subr.mxu0 %v197
    %350 = vmatpush1.msra.mxu0 %v196
    %351 = vmatprep.subr.mxu0 %v199
    %352 = vmatpush1.msra.mxu0 %v198
    %353 = vmatprep.subr.mxu0 %v201
    %354 = vmatpush1.msra.mxu0 %v200
    %355 = vmatprep.subr.mxu0 %v203
    %356 = vmatpush1.msra.mxu0 %v202
    %357 = vmatprep.subr.mxu0 %v205
    %358 = vmatpush1.msra.mxu0 %v204
    %359 = vmatprep.subr.mxu0 %v207
    %360 = vmatpush1.msra.mxu0 %v206
    %361 = vmatprep.subr.mxu0 %v209
    %362 = vmatpush1.msra.mxu0 %v208
    %363 = vmatprep.subr.mxu0 %v211
    %364 = vmatpush1.msra.mxu0 %v210
    %365 = vmatprep.subr.mxu0 %v213
    %366 = vmatpush1.msra.mxu0 %v212
    %367 = vmatprep.subr.mxu0 %v215
    %368 = vmatpush1.msra.mxu0 %v214
    %369 = vmatprep.subr.mxu0 %v217
    %370 = vmatpush1.msra.mxu0 %v216
    %371 = vmatprep.subr.mxu0 %v219
    %372 = vmatpush1.msra.mxu0 %v218
    %373 = vmatprep.subr.mxu0 %v221
    %374 = vmatpush1.msra.mxu0 %v220
    %375 = vmatprep.subr.mxu0 %v223
    %376 = vmatpush1.msra.mxu0 %v222
    %377 = vmatprep.subr.mxu0 %v225
    %378 = vmatpush1.msra.mxu0 %v224
    %379 = vmatprep.subr.mxu0 %v227
    %380 = vmatpush1.msra.mxu0 %v226
    %381 = vmatprep.mubr.f32.mxu0 %v95
    %382 = vmatmul.mubr.f32.gmra.mrb[0].mxu0 %v94
    %v383 = vpop.f32.mrb[0].mxu0
    %v384 = vadd.f32 %v307, %v383
    %v385 = vpop.f32.mrb[0].mxu0
    %v386 = vadd.f32 %v309, %v385
    %387 = vmatprep.mubr.f32.mxu0 %v99
    %388 = vmatmul.mubr.f32.gmra.mrb[0].mxu0 %v98
    %v389 = vpop.f32.mrb[0].mxu0
    %v390 = vadd.f32 %v313, %v389
    %v391 = vpop.f32.mrb[0].mxu0
    %v392 = vadd.f32 %v315, %v391
    %393 = vdwg.mxu0
    %v394 = vmax.f32 %v384, 0.0
    %v395 = vmax.f32 %v386, 0.0
    %v396 = vmax.f32 %v390, 0.0
    %v397 = vmax.f32 %v392, 0.0
    %398 = vst [vmem:[#allocation10] sm:$0xff] %v394
    %399 = vst [vmem:[#allocation10 + $0x8] sm:$0xff] %v395
    %400 = vst [vmem:[#allocation10 + $0x10] sm:$0xf] %v396
    %401 = vst [vmem:[#allocation10 + $0x18] sm:$0xf] %v397
    %v402 = vld [vmem:[%s1] sm:$0xf]
    %v403 = vld [vmem:[#allocation7] sm:$0xff]
    %v404 = vld [vmem:[#allocation7 + $0x8] sm:$0xff]
    %v405 = vld [vmem:[#allocation7 + $0x10] sm:$0xff]
    %v406 = vld [vmem:[#allocation7 + $0x18] sm:$0xff]
    %v407 = vld [vmem:[#allocation7 + $0x20] sm:$0xff]
    %v408 = vld [vmem:[#allocation7 + $0x28] sm:$0xff]
    %v409 = vld [vmem:[#allocation7 + $0x30] sm:$0xff]
    %v410 = vld [vmem:[#allocation7 + $0x38] sm:$0xff]
    %v411 = vld [vmem:[#allocation7 + $0x40] sm:$0xff]
    %v412 = vld [vmem:[#allocation7 + $0x48] sm:$0xff]
    %v413 = vld [vmem:[#allocation7 + $0x50] sm:$0xff]
    %v414 = vld [vmem:[#allocation7 + $0x58] sm:$0xff]
    %v415 = vld [vmem:[#allocation7 + $0x60] sm:$0xff]
    %v416 = vld [vmem:[#allocation7 + $0x68] sm:$0xff]
    %v417 = vld [vmem:[#allocation7 + $0x70] sm:$0xff]
    %v418 = vld [vmem:[#allocation7 + $0x78] sm:$0xff]
    %v419 = vld [vmem:[#allocation7 + $0x80] sm:$0xff]
    %v420 = vld [vmem:[#allocation7 + $0x88] sm:$0xff]
    %v421 = vld [vmem:[#allocation7 + $0x90] sm:$0xff]
    %v422 = vld [vmem:[#allocation7 + $0x98] sm:$0xff]
    %v423 = vld [vmem:[#allocation7 + $0xa0] sm:$0xff]
    %v424 = vld [vmem:[#allocation7 + $0xa8] sm:$0xff]
    %v425 = vld [vmem:[#allocation7 + $0xb0] sm:$0xff]
    %v426 = vld [vmem:[#allocation7 + $0xb8] sm:$0xff]
    %v427 = vld [vmem:[#allocation7 + $0xc0] sm:$0xff]
    %v428 = vld [vmem:[#allocation7 + $0xc8] sm:$0xff]
    %v429 = vld [vmem:[#allocation7 + $0xd0] sm:$0xff]
    %v430 = vld [vmem:[#allocation7 + $0xd8] sm:$0xff]
    %v431 = vld [vmem:[#allocation7 + $0xe0] sm:$0xff]
    %v432 = vld [vmem:[#allocation7 + $0xe8] sm:$0xff]
    %v433 = vld [vmem:[#allocation7 + $0xf0] sm:$0xff]
    %v434 = vld [vmem:[#allocation7 + $0xf8] sm:$0xff]
    %v435 = vld [vmem:[#allocation7 + $0x100] sm:$0xff]
    %v436 = vld [vmem:[#allocation7 + $0x108] sm:$0xff]
    %v437 = vld [vmem:[#allocation7 + $0x110] sm:$0xff]
    %v438 = vld [vmem:[#allocation7 + $0x118] sm:$0xff]
    %v439 = vld [vmem:[#allocation7 + $0x120] sm:$0xff]
    %v440 = vld [vmem:[#allocation7 + $0x128] sm:$0xff]
    %v441 = vld [vmem:[#allocation7 + $0x130] sm:$0xff]
    %v442 = vld [vmem:[#allocation7 + $0x138] sm:$0xff]
    %v443 = vld [vmem:[#allocation7 + $0x140] sm:$0xff]
    %v444 = vld [vmem:[#allocation7 + $0x148] sm:$0xff]
    %v445 = vld [vmem:[#allocation7 + $0x150] sm:$0xff]
    %v446 = vld [vmem:[#allocation7 + $0x158] sm:$0xff]
    %v447 = vld [vmem:[#allocation7 + $0x160] sm:$0xff]
    %v448 = vld [vmem:[#allocation7 + $0x168] sm:$0xff]
    %v449 = vld [vmem:[#allocation7 + $0x170] sm:$0xff]
    %v450 = vld [vmem:[#allocation7 + $0x178] sm:$0xff]
    %v451 = vld [vmem:[#allocation7 + $0x180] sm:$0xff]
    %v452 = vld [vmem:[#allocation7 + $0x188] sm:$0xff]
    %v453 = vld [vmem:[#allocation7 + $0x190] sm:$0xff]
    %v454 = vld [vmem:[#allocation7 + $0x198] sm:$0xff]
    %v455 = vld [vmem:[#allocation7 + $0x1a0] sm:$0xff]
    %v456 = vld [vmem:[#allocation7 + $0x1a8] sm:$0xff]
    %v457 = vld [vmem:[#allocation7 + $0x1b0] sm:$0xff]
    %v458 = vld [vmem:[#allocation7 + $0x1b8] sm:$0xff]
    %v459 = vld [vmem:[#allocation7 + $0x1c0] sm:$0xff]
    %v460 = vld [vmem:[#allocation7 + $0x1c8] sm:$0xff]
    %v461 = vld [vmem:[#allocation7 + $0x1d0] sm:$0xff]
    %v462 = vld [vmem:[#allocation7 + $0x1d8] sm:$0xff]
    %v463 = vld [vmem:[#allocation7 + $0x1e0] sm:$0xff]
    %v464 = vld [vmem:[#allocation7 + $0x1e8] sm:$0xff]
    %v465 = vld [vmem:[#allocation7 + $0x1f0] sm:$0xff]
    %v466 = vld [vmem:[#allocation7 + $0x1f8] sm:$0xff]
    %v467 = vld [vmem:[#allocation7 + $0x200] sm:$0xff]
    %v468 = vld [vmem:[#allocation7 + $0x208] sm:$0xff]
    %v469 = vld [vmem:[#allocation7 + $0x210] sm:$0xff]
    %v470 = vld [vmem:[#allocation7 + $0x218] sm:$0xff]
    %v471 = vld [vmem:[#allocation7 + $0x220] sm:$0xff]
    %v472 = vld [vmem:[#allocation7 + $0x228] sm:$0xff]
    %v473 = vld [vmem:[#allocation7 + $0x230] sm:$0xff]
    %v474 = vld [vmem:[#allocation7 + $0x238] sm:$0xff]
    %v475 = vld [vmem:[#allocation7 + $0x240] sm:$0xff]
    %v476 = vld [vmem:[#allocation7 + $0x248] sm:$0xff]
    %v477 = vld [vmem:[#allocation7 + $0x250] sm:$0xff]
    %v478 = vld [vmem:[#allocation7 + $0x258] sm:$0xff]
    %v479 = vld [vmem:[#allocation7 + $0x260] sm:$0xff]
    %v480 = vld [vmem:[#allocation7 + $0x268] sm:$0xff]
    %v481 = vld [vmem:[#allocation7 + $0x270] sm:$0xff]
    %v482 = vld [vmem:[#allocation7 + $0x278] sm:$0xff]
    %v483 = vld [vmem:[#allocation7 + $0x280] sm:$0xff]
    %v484 = vld [vmem:[#allocation7 + $0x288] sm:$0xff]
    %v485 = vld [vmem:[#allocation7 + $0x290] sm:$0xff]
    %v486 = vld [vmem:[#allocation7 + $0x298] sm:$0xff]
    %v487 = vld [vmem:[#allocation7 + $0x2a0] sm:$0xff]
    %v488 = vld [vmem:[#allocation7 + $0x2a8] sm:$0xff]
    %v489 = vld [vmem:[#allocation7 + $0x2b0] sm:$0xff]
    %v490 = vld [vmem:[#allocation7 + $0x2b8] sm:$0xff]
    %v491 = vld [vmem:[#allocation7 + $0x2c0] sm:$0xff]
    %v492 = vld [vmem:[#allocation7 + $0x2c8] sm:$0xff]
    %v493 = vld [vmem:[#allocation7 + $0x2d0] sm:$0xff]
    %v494 = vld [vmem:[#allocation7 + $0x2d8] sm:$0xff]
    %v495 = vld [vmem:[#allocation7 + $0x2e0] sm:$0xff]
    %v496 = vld [vmem:[#allocation7 + $0x2e8] sm:$0xff]
    %v497 = vld [vmem:[#allocation7 + $0x2f0] sm:$0xff]
    %v498 = vld [vmem:[#allocation7 + $0x2f8] sm:$0xff]
    %v499 = vld [vmem:[#allocation7 + $0x300] sm:$0xff]
    %v500 = vld [vmem:[#allocation7 + $0x308] sm:$0xff]
    %v501 = vld [vmem:[#allocation7 + $0x310] sm:$0xff]
    %v502 = vld [vmem:[#allocation7 + $0x318] sm:$0xff]
    %v503 = vld [vmem:[#allocation7 + $0x320] sm:$0xff]
    %v504 = vld [vmem:[#allocation7 + $0x328] sm:$0xff]
    %v505 = vld [vmem:[#allocation7 + $0x330] sm:$0xff]
    %v506 = vld [vmem:[#allocation7 + $0x338] sm:$0xff]
    %v507 = vld [vmem:[#allocation7 + $0x340] sm:$0xff]
    %v508 = vld [vmem:[#allocation7 + $0x348] sm:$0xff]
    %v509 = vld [vmem:[#allocation7 + $0x350] sm:$0xff]
    %v510 = vld [vmem:[#allocation7 + $0x358] sm:$0xff]
    %v511 = vld [vmem:[#allocation7 + $0x360] sm:$0xff]
    %v512 = vld [vmem:[#allocation7 + $0x368] sm:$0xff]
    %v513 = vld [vmem:[#allocation7 + $0x370] sm:$0xff]
    %v514 = vld [vmem:[#allocation7 + $0x378] sm:$0xff]
    %v515 = vld [vmem:[#allocation7 + $0x380] sm:$0xff]
    %v516 = vld [vmem:[#allocation7 + $0x388] sm:$0xff]
    %v517 = vld [vmem:[#allocation7 + $0x390] sm:$0xff]
    %v518 = vld [vmem:[#allocation7 + $0x398] sm:$0xff]
    %v519 = vld [vmem:[#allocation7 + $0x3a0] sm:$0xff]
    %v520 = vld [vmem:[#allocation7 + $0x3a8] sm:$0xff]
    %v521 = vld [vmem:[#allocation7 + $0x3b0] sm:$0xff]
    %v522 = vld [vmem:[#allocation7 + $0x3b8] sm:$0xff]
    %v523 = vld [vmem:[#allocation7 + $0x3c0] sm:$0xff]
    %v524 = vld [vmem:[#allocation7 + $0x3c8] sm:$0xff]
    %v525 = vld [vmem:[#allocation7 + $0x3d0] sm:$0xff]
    %v526 = vld [vmem:[#allocation7 + $0x3d8] sm:$0xff]
    %v527 = vld [vmem:[#allocation7 + $0x3e0] sm:$0xff]
    %v528 = vld [vmem:[#allocation7 + $0x3e8] sm:$0xff]
    %v529 = vld [vmem:[#allocation7 + $0x3f0] sm:$0xff]
    %v530 = vld [vmem:[#allocation7 + $0x3f8] sm:$0xff]
    %v531 = vld [vmem:[%s7] sm:$0x3]
    %v533 = vlaneseq
    %v534 = vshrl.u32 %v533, 7
    %v535 = vsub.s32 0, %v534
    %v536 = vrot.slane %v402, %v535
    %v537 = vlaneseq
    %v538 = vshrl.u32 %v537, 7
    %v539 = vsub.s32 1, %v538
    %v540 = vrot.slane %v402, %v539
    %v541 = vlaneseq
    %v542 = vshrl.u32 %v541, 7
    %v543 = vsub.s32 2, %v542
    %v544 = vrot.slane %v402, %v543
    %v545 = vlaneseq
    %v546 = vshrl.u32 %v545, 7
    %v547 = vsub.s32 3, %v546
    %v548 = vrot.slane %v402, %v547
    %v554 = vlaneseq
    %v555 = vshrl.u32 %v554, 7
    %v556 = vsub.s32 0, %v555
    %v557 = vrot.slane %v531, %v556
    %v558 = vlaneseq
    %v559 = vshrl.u32 %v558, 7
    %v560 = vsub.s32 1, %v559
    %v561 = vrot.slane %v531, %v560
    %564 = vmatprep.subr.mxu0 %v404
    %565 = vmatpush1.msra.mxu0 %v403
    %566 = vmatprep.subr.mxu0 %v406
    %567 = vmatpush1.msra.mxu0 %v405
    %568 = vmatprep.subr.mxu0 %v408
    %569 = vmatpush1.msra.mxu0 %v407
    %570 = vmatprep.subr.mxu0 %v410
    %571 = vmatpush1.msra.mxu0 %v409
    %572 = vmatprep.subr.mxu0 %v412
    %573 = vmatpush1.msra.mxu0 %v411
    %574 = vmatprep.subr.mxu0 %v414
    %575 = vmatpush1.msra.mxu0 %v413
    %576 = vmatprep.subr.mxu0 %v416
    %577 = vmatpush1.msra.mxu0 %v415
    %578 = vmatprep.subr.mxu0 %v418
    %579 = vmatpush1.msra.mxu0 %v417
    %580 = vmatprep.subr.mxu0 %v420
    %581 = vmatpush1.msra.mxu0 %v419
    %582 = vmatprep.subr.mxu0 %v422
    %583 = vmatpush1.msra.mxu0 %v421
    %584 = vmatprep.subr.mxu0 %v424
    %585 = vmatpush1.msra.mxu0 %v423
    %586 = vmatprep.subr.mxu0 %v426
    %587 = vmatpush1.msra.mxu0 %v425
    %588 = vmatprep.subr.mxu0 %v428
    %589 = vmatpush1.msra.mxu0 %v427
    %590 = vmatprep.subr.mxu0 %v430
    %591 = vmatpush1.msra.mxu0 %v429
    %592 = vmatprep.subr.mxu0 %v432
    %593 = vmatpush1.msra.mxu0 %v431
    %594 = vmatprep.subr.mxu0 %v434
    %595 = vmatpush1.msra.mxu0 %v433
    %596 = vmatprep.subr.mxu0 %v436
    %597 = vmatpush1.msra.mxu0 %v435
    %598 = vmatprep.subr.mxu0 %v438
    %599 = vmatpush1.msra.mxu0 %v437
    %600 = vmatprep.subr.mxu0 %v440
    %601 = vmatpush1.msra.mxu0 %v439
    %602 = vmatprep.subr.mxu0 %v442
    %603 = vmatpush1.msra.mxu0 %v441
    %604 = vmatprep.subr.mxu0 %v444
    %605 = vmatpush1.msra.mxu0 %v443
    %606 = vmatprep.subr.mxu0 %v446
    %607 = vmatpush1.msra.mxu0 %v445
    %608 = vmatprep.subr.mxu0 %v448
    %609 = vmatpush1.msra.mxu0 %v447
    %610 = vmatprep.subr.mxu0 %v450
    %611 = vmatpush1.msra.mxu0 %v449
    %612 = vmatprep.subr.mxu0 %v452
    %613 = vmatpush1.msra.mxu0 %v451
    %614 = vmatprep.subr.mxu0 %v454
    %615 = vmatpush1.msra.mxu0 %v453
    %616 = vmatprep.subr.mxu0 %v456
    %617 = vmatpush1.msra.mxu0 %v455
    %618 = vmatprep.subr.mxu0 %v458
    %619 = vmatpush1.msra.mxu0 %v457
    %620 = vmatprep.subr.mxu0 %v460
    %621 = vmatpush1.msra.mxu0 %v459
    %622 = vmatprep.subr.mxu0 %v462
    %623 = vmatpush1.msra.mxu0 %v461
    %624 = vmatprep.subr.mxu0 %v464
    %625 = vmatpush1.msra.mxu0 %v463
    %626 = vmatprep.subr.mxu0 %v466
    %627 = vmatpush1.msra.mxu0 %v465
    %628 = vmatprep.mubr.f32.mxu0 %v540
    %629 = vmatmul.mubr.f32.gmra.mrb[0].mxu0 %v536
    %v630 = vpop.f32.mrb[0].mxu0
    %v631 = vadd.f32 %v557, %v630
    %v632 = vpop.f32.mrb[0].mxu0
    %v633 = vadd.f32 %v561, %v632
    %634 = vdwg.mxu0
    %635 = vmatprep.subr.mxu0 %v468
    %636 = vmatpush1.msra.mxu0 %v467
    %637 = vmatprep.subr.mxu0 %v470
    %638 = vmatpush1.msra.mxu0 %v469
    %639 = vmatprep.subr.mxu0 %v472
    %640 = vmatpush1.msra.mxu0 %v471
    %641 = vmatprep.subr.mxu0 %v474
    %642 = vmatpush1.msra.mxu0 %v473
    %643 = vmatprep.subr.mxu0 %v476
    %644 = vmatpush1.msra.mxu0 %v475
    %645 = vmatprep.subr.mxu0 %v478
    %646 = vmatpush1.msra.mxu0 %v477
    %647 = vmatprep.subr.mxu0 %v480
    %648 = vmatpush1.msra.mxu0 %v479
    %649 = vmatprep.subr.mxu0 %v482
    %650 = vmatpush1.msra.mxu0 %v481
    %651 = vmatprep.subr.mxu0 %v484
    %652 = vmatpush1.msra.mxu0 %v483
    %653 = vmatprep.subr.mxu0 %v486
    %654 = vmatpush1.msra.mxu0 %v485
    %655 = vmatprep.subr.mxu0 %v488
    %656 = vmatpush1.msra.mxu0 %v487
    %657 = vmatprep.subr.mxu0 %v490
    %658 = vmatpush1.msra.mxu0 %v489
    %659 = vmatprep.subr.mxu0 %v492
    %660 = vmatpush1.msra.mxu0 %v491
    %661 = vmatprep.subr.mxu0 %v494
    %662 = vmatpush1.msra.mxu0 %v493
    %663 = vmatprep.subr.mxu0 %v496
    %664 = vmatpush1.msra.mxu0 %v495
    %665 = vmatprep.subr.mxu0 %v498
    %666 = vmatpush1.msra.mxu0 %v497
    %667 = vmatprep.subr.mxu0 %v500
    %668 = vmatpush1.msra.mxu0 %v499
    %669 = vmatprep.subr.mxu0 %v502
    %670 = vmatpush1.msra.mxu0 %v501
    %671 = vmatprep.subr.mxu0 %v504
    %672 = vmatpush1.msra.mxu0 %v503
    %673 = vmatprep.subr.mxu0 %v506
    %674 = vmatpush1.msra.mxu0 %v505
    %675 = vmatprep.subr.mxu0 %v508
    %676 = vmatpush1.msra.mxu0 %v507
    %677 = vmatprep.subr.mxu0 %v510
    %678 = vmatpush1.msra.mxu0 %v509
    %679 = vmatprep.subr.mxu0 %v512
    %680 = vmatpush1.msra.mxu0 %v511
    %681 = vmatprep.subr.mxu0 %v514
    %682 = vmatpush1.msra.mxu0 %v513
    %683 = vmatprep.subr.mxu0 %v516
    %684 = vmatpush1.msra.mxu0 %v515
    %685 = vmatprep.subr.mxu0 %v518
    %686 = vmatpush1.msra.mxu0 %v517
    %687 = vmatprep.subr.mxu0 %v520
    %688 = vmatpush1.msra.mxu0 %v519
    %689 = vmatprep.subr.mxu0 %v522
    %690 = vmatpush1.msra.mxu0 %v521
    %691 = vmatprep.subr.mxu0 %v524
    %692 = vmatpush1.msra.mxu0 %v523
    %693 = vmatprep.subr.mxu0 %v526
    %694 = vmatpush1.msra.mxu0 %v525
    %695 = vmatprep.subr.mxu0 %v528
    %696 = vmatpush1.msra.mxu0 %v527
    %697 = vmatprep.subr.mxu0 %v530
    %698 = vmatpush1.msra.mxu0 %v529
    %699 = vmatprep.mubr.f32.mxu0 %v548
    %700 = vmatmul.mubr.f32.gmra.mrb[0].mxu0 %v544
    %v701 = vpop.f32.mrb[0].mxu0
    %v702 = vadd.f32 %v631, %v701
    %v703 = vpop.f32.mrb[0].mxu0
    %v704 = vadd.f32 %v633, %v703
    %705 = vdwg.mxu0
    %v706 = vmax.f32 %v702, 0.0
    %v707 = vmax.f32 %v704, 0.0
    %v708 = vlaneseq
    %v709 = vshrl.u32 %v708, 7
    %v710 = vsub.s32 0, %v709
    %v711 = vrot.slane %v706, %v710
    %v712 = vlaneseq
    %v713 = vshrl.u32 %v712, 7
    %v714 = vsub.s32 0, %v713
    %v715 = vrot.slane %v707, %v714
    %716 = vst [vmem:[#allocation11] sm:$0xff] %v711
    %717 = vst [vmem:[#allocation11 + $0x8] sm:$0xff] %v715
    %718 = vst [vmem:[#allocation11 + $0x10] sm:$0xf] %v711
    %719 = vst [vmem:[#allocation11 + $0x18] sm:$0xf] %v715
    %v720 = vld [vmem:[%s2] sm:$0xf]
    %v721 = vld [vmem:[#allocation8] sm:$0xff]
    %v722 = vld [vmem:[#allocation8 + $0x8] sm:$0xff]
    %v723 = vld [vmem:[#allocation8 + $0x10] sm:$0xff]
    %v724 = vld [vmem:[#allocation8 + $0x18] sm:$0xff]
    %v725 = vld [vmem:[#allocation8 + $0x20] sm:$0xff]
    %v726 = vld [vmem:[#allocation8 + $0x28] sm:$0xff]
    %v727 = vld [vmem:[#allocation8 + $0x30] sm:$0xff]
    %v728 = vld [vmem:[#allocation8 + $0x38] sm:$0xff]
    %v729 = vld [vmem:[#allocation8 + $0x40] sm:$0xff]
    %v730 = vld [vmem:[#allocation8 + $0x48] sm:$0xff]
    %v731 = vld [vmem:[#allocation8 + $0x50] sm:$0xff]
    %v732 = vld [vmem:[#allocation8 + $0x58] sm:$0xff]
    %v733 = vld [vmem:[#allocation8 + $0x60] sm:$0xff]
    %v734 = vld [vmem:[#allocation8 + $0x68] sm:$0xff]
    %v735 = vld [vmem:[#allocation8 + $0x70] sm:$0xff]
    %v736 = vld [vmem:[#allocation8 + $0x78] sm:$0xff]
    %v737 = vld [vmem:[#allocation8 + $0x80] sm:$0xff]
    %v738 = vld [vmem:[#allocation8 + $0x88] sm:$0xff]
    %v739 = vld [vmem:[#allocation8 + $0x90] sm:$0xff]
    %v740 = vld [vmem:[#allocation8 + $0x98] sm:$0xff]
    %v741 = vld [vmem:[#allocation8 + $0xa0] sm:$0xff]
    %v742 = vld [vmem:[#allocation8 + $0xa8] sm:$0xff]
    %v743 = vld [vmem:[#allocation8 + $0xb0] sm:$0xff]
    %v744 = vld [vmem:[#allocation8 + $0xb8] sm:$0xff]
    %v745 = vld [vmem:[#allocation8 + $0xc0] sm:$0xff]
    %v746 = vld [vmem:[#allocation8 + $0xc8] sm:$0xff]
    %v747 = vld [vmem:[#allocation8 + $0xd0] sm:$0xff]
    %v748 = vld [vmem:[#allocation8 + $0xd8] sm:$0xff]
    %v749 = vld [vmem:[#allocation8 + $0xe0] sm:$0xff]
    %v750 = vld [vmem:[#allocation8 + $0xe8] sm:$0xff]
    %v751 = vld [vmem:[#allocation8 + $0xf0] sm:$0xff]
    %v752 = vld [vmem:[#allocation8 + $0xf8] sm:$0xff]
    %v753 = vld [vmem:[#allocation8 + $0x100] sm:$0xff]
    %v754 = vld [vmem:[#allocation8 + $0x108] sm:$0xff]
    %v755 = vld [vmem:[#allocation8 + $0x110] sm:$0xff]
    %v756 = vld [vmem:[#allocation8 + $0x118] sm:$0xff]
    %v757 = vld [vmem:[#allocation8 + $0x120] sm:$0xff]
    %v758 = vld [vmem:[#allocation8 + $0x128] sm:$0xff]
    %v759 = vld [vmem:[#allocation8 + $0x130] sm:$0xff]
    %v760 = vld [vmem:[#allocation8 + $0x138] sm:$0xff]
    %v761 = vld [vmem:[#allocation8 + $0x140] sm:$0xff]
    %v762 = vld [vmem:[#allocation8 + $0x148] sm:$0xff]
    %v763 = vld [vmem:[#allocation8 + $0x150] sm:$0xff]
    %v764 = vld [vmem:[#allocation8 + $0x158] sm:$0xff]
    %v765 = vld [vmem:[#allocation8 + $0x160] sm:$0xff]
    %v766 = vld [vmem:[#allocation8 + $0x168] sm:$0xff]
    %v767 = vld [vmem:[#allocation8 + $0x170] sm:$0xff]
    %v768 = vld [vmem:[#allocation8 + $0x178] sm:$0xff]
    %v769 = vld [vmem:[#allocation8 + $0x180] sm:$0xff]
    %v770 = vld [vmem:[#allocation8 + $0x188] sm:$0xff]
    %v771 = vld [vmem:[#allocation8 + $0x190] sm:$0xff]
    %v772 = vld [vmem:[#allocation8 + $0x198] sm:$0xff]
    %v773 = vld [vmem:[#allocation8 + $0x1a0] sm:$0xff]
    %v774 = vld [vmem:[#allocation8 + $0x1a8] sm:$0xff]
    %v775 = vld [vmem:[#allocation8 + $0x1b0] sm:$0xff]
    %v776 = vld [vmem:[#allocation8 + $0x1b8] sm:$0xff]
    %v777 = vld [vmem:[#allocation8 + $0x1c0] sm:$0xff]
    %v778 = vld [vmem:[#allocation8 + $0x1c8] sm:$0xff]
    %v779 = vld [vmem:[#allocation8 + $0x1d0] sm:$0xff]
    %v780 = vld [vmem:[#allocation8 + $0x1d8] sm:$0xff]
    %v781 = vld [vmem:[#allocation8 + $0x1e0] sm:$0xff]
    %v782 = vld [vmem:[#allocation8 + $0x1e8] sm:$0xff]
    %v783 = vld [vmem:[#allocation8 + $0x1f0] sm:$0xff]
    %v784 = vld [vmem:[#allocation8 + $0x1f8] sm:$0xff]
    %v785 = vld [vmem:[#allocation8 + $0x200] sm:$0xff]
    %v786 = vld [vmem:[#allocation8 + $0x208] sm:$0xff]
    %v787 = vld [vmem:[#allocation8 + $0x210] sm:$0xff]
    %v788 = vld [vmem:[#allocation8 + $0x218] sm:$0xff]
    %v789 = vld [vmem:[#allocation8 + $0x220] sm:$0xff]
    %v790 = vld [vmem:[#allocation8 + $0x228] sm:$0xff]
    %v791 = vld [vmem:[#allocation8 + $0x230] sm:$0xff]
    %v792 = vld [vmem:[#allocation8 + $0x238] sm:$0xff]
    %v793 = vld [vmem:[#allocation8 + $0x240] sm:$0xff]
    %v794 = vld [vmem:[#allocation8 + $0x248] sm:$0xff]
    %v795 = vld [vmem:[#allocation8 + $0x250] sm:$0xff]
    %v796 = vld [vmem:[#allocation8 + $0x258] sm:$0xff]
    %v797 = vld [vmem:[#allocation8 + $0x260] sm:$0xff]
    %v798 = vld [vmem:[#allocation8 + $0x268] sm:$0xff]
    %v799 = vld [vmem:[#allocation8 + $0x270] sm:$0xff]
    %v800 = vld [vmem:[#allocation8 + $0x278] sm:$0xff]
    %v801 = vld [vmem:[#allocation8 + $0x280] sm:$0xff]
    %v802 = vld [vmem:[#allocation8 + $0x288] sm:$0xff]
    %v803 = vld [vmem:[#allocation8 + $0x290] sm:$0xff]
    %v804 = vld [vmem:[#allocation8 + $0x298] sm:$0xff]
    %v805 = vld [vmem:[#allocation8 + $0x2a0] sm:$0xff]
    %v806 = vld [vmem:[#allocation8 + $0x2a8] sm:$0xff]
    %v807 = vld [vmem:[#allocation8 + $0x2b0] sm:$0xff]
    %v808 = vld [vmem:[#allocation8 + $0x2b8] sm:$0xff]
    %v809 = vld [vmem:[#allocation8 + $0x2c0] sm:$0xff]
    %v810 = vld [vmem:[#allocation8 + $0x2c8] sm:$0xff]
    %v811 = vld [vmem:[#allocation8 + $0x2d0] sm:$0xff]
    %v812 = vld [vmem:[#allocation8 + $0x2d8] sm:$0xff]
    %v813 = vld [vmem:[#allocation8 + $0x2e0] sm:$0xff]
    %v814 = vld [vmem:[#allocation8 + $0x2e8] sm:$0xff]
    %v815 = vld [vmem:[#allocation8 + $0x2f0] sm:$0xff]
    %v816 = vld [vmem:[#allocation8 + $0x2f8] sm:$0xff]
    %v817 = vld [vmem:[#allocation8 + $0x300] sm:$0xff]
    %v818 = vld [vmem:[#allocation8 + $0x308] sm:$0xff]
    %v819 = vld [vmem:[#allocation8 + $0x310] sm:$0xff]
    %v820 = vld [vmem:[#allocation8 + $0x318] sm:$0xff]
    %v821 = vld [vmem:[#allocation8 + $0x320] sm:$0xff]
    %v822 = vld [vmem:[#allocation8 + $0x328] sm:$0xff]
    %v823 = vld [vmem:[#allocation8 + $0x330] sm:$0xff]
    %v824 = vld [vmem:[#allocation8 + $0x338] sm:$0xff]
    %v825 = vld [vmem:[#allocation8 + $0x340] sm:$0xff]
    %v826 = vld [vmem:[#allocation8 + $0x348] sm:$0xff]
    %v827 = vld [vmem:[#allocation8 + $0x350] sm:$0xff]
    %v828 = vld [vmem:[#allocation8 + $0x358] sm:$0xff]
    %v829 = vld [vmem:[#allocation8 + $0x360] sm:$0xff]
    %v830 = vld [vmem:[#allocation8 + $0x368] sm:$0xff]
    %v831 = vld [vmem:[#allocation8 + $0x370] sm:$0xff]
    %v832 = vld [vmem:[#allocation8 + $0x378] sm:$0xff]
    %v833 = vld [vmem:[#allocation8 + $0x380] sm:$0xff]
    %v834 = vld [vmem:[#allocation8 + $0x388] sm:$0xff]
    %v835 = vld [vmem:[#allocation8 + $0x390] sm:$0xff]
    %v836 = vld [vmem:[#allocation8 + $0x398] sm:$0xff]
    %v837 = vld [vmem:[#allocation8 + $0x3a0] sm:$0xff]
    %v838 = vld [vmem:[#allocation8 + $0x3a8] sm:$0xff]
    %v839 = vld [vmem:[#allocation8 + $0x3b0] sm:$0xff]
    %v840 = vld [vmem:[#allocation8 + $0x3b8] sm:$0xff]
    %v841 = vld [vmem:[#allocation8 + $0x3c0] sm:$0xff]
    %v842 = vld [vmem:[#allocation8 + $0x3c8] sm:$0xff]
    %v843 = vld [vmem:[#allocation8 + $0x3d0] sm:$0xff]
    %v844 = vld [vmem:[#allocation8 + $0x3d8] sm:$0xff]
    %v845 = vld [vmem:[#allocation8 + $0x3e0] sm:$0xff]
    %v846 = vld [vmem:[#allocation8 + $0x3e8] sm:$0xff]
    %v847 = vld [vmem:[#allocation8 + $0x3f0] sm:$0xff]
    %v848 = vld [vmem:[#allocation8 + $0x3f8] sm:$0xff]
    %v849 = vld [vmem:[%s8] sm:$0x3]
    %v851 = vlaneseq
    %v852 = vshrl.u32 %v851, 7
    %v853 = vsub.s32 0, %v852
    %v854 = vrot.slane %v720, %v853
    %v855 = vlaneseq
    %v856 = vshrl.u32 %v855, 7
    %v857 = vsub.s32 1, %v856
    %v858 = vrot.slane %v720, %v857
    %v859 = vlaneseq
    %v860 = vshrl.u32 %v859, 7
    %v861 = vsub.s32 2, %v860
    %v862 = vrot.slane %v720, %v861
    %v863 = vlaneseq
    %v864 = vshrl.u32 %v863, 7
    %v865 = vsub.s32 3, %v864
    %v866 = vrot.slane %v720, %v865
    %v872 = vlaneseq
    %v873 = vshrl.u32 %v872, 7
    %v874 = vsub.s32 0, %v873
    %v875 = vrot.slane %v849, %v874
    %v876 = vlaneseq
    %v877 = vshrl.u32 %v876, 7
    %v878 = vsub.s32 1, %v877
    %v879 = vrot.slane %v849, %v878
    %882 = vmatprep.subr.mxu0 %v722
    %883 = vmatpush1.msra.mxu0 %v721
    %884 = vmatprep.subr.mxu0 %v724
    %885 = vmatpush1.msra.mxu0 %v723
    %886 = vmatprep.subr.mxu0 %v726
    %887 = vmatpush1.msra.mxu0 %v725
    %888 = vmatprep.subr.mxu0 %v728
    %889 = vmatpush1.msra.mxu0 %v727
    %890 = vmatprep.subr.mxu0 %v730
    %891 = vmatpush1.msra.mxu0 %v729
    %892 = vmatprep.subr.mxu0 %v732
    %893 = vmatpush1.msra.mxu0 %v731
    %894 = vmatprep.subr.mxu0 %v734
    %895 = vmatpush1.msra.mxu0 %v733
    %896 = vmatprep.subr.mxu0 %v736
    %897 = vmatpush1.msra.mxu0 %v735
    %898 = vmatprep.subr.mxu0 %v738
    %899 = vmatpush1.msra.mxu0 %v737
    %900 = vmatprep.subr.mxu0 %v740
    %901 = vmatpush1.msra.mxu0 %v739
    %902 = vmatprep.subr.mxu0 %v742
    %903 = vmatpush1.msra.mxu0 %v741
    %904 = vmatprep.subr.mxu0 %v744
    %905 = vmatpush1.msra.mxu0 %v743
    %906 = vmatprep.subr.mxu0 %v746
    %907 = vmatpush1.msra.mxu0 %v745
    %908 = vmatprep.subr.mxu0 %v748
    %909 = vmatpush1.msra.mxu0 %v747
    %910 = vmatprep.subr.mxu0 %v750
    %911 = vmatpush1.msra.mxu0 %v749
    %912 = vmatprep.subr.mxu0 %v752
    %913 = vmatpush1.msra.mxu0 %v751
    %914 = vmatprep.subr.mxu0 %v754
    %915 = vmatpush1.msra.mxu0 %v753
    %916 = vmatprep.subr.mxu0 %v756
    %917 = vmatpush1.msra.mxu0 %v755
    %918 = vmatprep.subr.mxu0 %v758
    %919 = vmatpush1.msra.mxu0 %v757
    %920 = vmatprep.subr.mxu0 %v760
    %921 = vmatpush1.msra.mxu0 %v759
    %922 = vmatprep.subr.mxu0 %v762
    %923 = vmatpush1.msra.mxu0 %v761
    %924 = vmatprep.subr.mxu0 %v764
    %925 = vmatpush1.msra.mxu0 %v763
    %926 = vmatprep.subr.mxu0 %v766
    %927 = vmatpush1.msra.mxu0 %v765
    %928 = vmatprep.subr.mxu0 %v768
    %929 = vmatpush1.msra.mxu0 %v767
    %930 = vmatprep.subr.mxu0 %v770
    %931 = vmatpush1.msra.mxu0 %v769
    %932 = vmatprep.subr.mxu0 %v772
    %933 = vmatpush1.msra.mxu0 %v771
    %934 = vmatprep.subr.mxu0 %v774
    %935 = vmatpush1.msra.mxu0 %v773
    %936 = vmatprep.subr.mxu0 %v776
    %937 = vmatpush1.msra.mxu0 %v775
    %938 = vmatprep.subr.mxu0 %v778
    %939 = vmatpush1.msra.mxu0 %v777
    %940 = vmatprep.subr.mxu0 %v780
    %941 = vmatpush1.msra.mxu0 %v779
    %942 = vmatprep.subr.mxu0 %v782
    %943 = vmatpush1.msra.mxu0 %v781
    %944 = vmatprep.subr.mxu0 %v784
    %945 = vmatpush1.msra.mxu0 %v783
    %946 = vmatprep.mubr.f32.mxu0 %v858
    %947 = vmatmul.mubr.f32.gmra.mrb[0].mxu0 %v854
    %v948 = vpop.f32.mrb[0].mxu0
    %v949 = vadd.f32 %v875, %v948
    %v950 = vpop.f32.mrb[0].mxu0
    %v951 = vadd.f32 %v879, %v950
    %952 = vdwg.mxu0
    %953 = vmatprep.subr.mxu0 %v786
    %954 = vmatpush1.msra.mxu0 %v785
    %955 = vmatprep.subr.mxu0 %v788
    %956 = vmatpush1.msra.mxu0 %v787
    %957 = vmatprep.subr.mxu0 %v790
    %958 = vmatpush1.msra.mxu0 %v789
    %959 = vmatprep.subr.mxu0 %v792
    %960 = vmatpush1.msra.mxu0 %v791
    %961 = vmatprep.subr.mxu0 %v794
    %962 = vmatpush1.msra.mxu0 %v793
    %963 = vmatprep.subr.mxu0 %v796
    %964 = vmatpush1.msra.mxu0 %v795
    %965 = vmatprep.subr.mxu0 %v798
    %966 = vmatpush1.msra.mxu0 %v797
    %967 = vmatprep.subr.mxu0 %v800
    %968 = vmatpush1.msra.mxu0 %v799
    %969 = vmatprep.subr.mxu0 %v802
    %970 = vmatpush1.msra.mxu0 %v801
    %971 = vmatprep.subr.mxu0 %v804
    %972 = vmatpush1.msra.mxu0 %v803
    %973 = vmatprep.subr.mxu0 %v806
    %974 = vmatpush1.msra.mxu0 %v805
    %975 = vmatprep.subr.mxu0 %v808
    %976 = vmatpush1.msra.mxu0 %v807
    %977 = vmatprep.subr.mxu0 %v810
    %978 = vmatpush1.msra.mxu0 %v809
    %979 = vmatprep.subr.mxu0 %v812
    %980 = vmatpush1.msra.mxu0 %v811
    %981 = vmatprep.subr.mxu0 %v814
    %982 = vmatpush1.msra.mxu0 %v813
    %983 = vmatprep.subr.mxu0 %v816
    %984 = vmatpush1.msra.mxu0 %v815
    %985 = vmatprep.subr.mxu0 %v818
    %986 = vmatpush1.msra.mxu0 %v817
    %987 = vmatprep.subr.mxu0 %v820
    %988 = vmatpush1.msra.mxu0 %v819
    %989 = vmatprep.subr.mxu0 %v822
    %990 = vmatpush1.msra.mxu0 %v821
    %991 = vmatprep.subr.mxu0 %v824
    %992 = vmatpush1.msra.mxu0 %v823
    %993 = vmatprep.subr.mxu0 %v826
    %994 = vmatpush1.msra.mxu0 %v825
    %995 = vmatprep.subr.mxu0 %v828
    %996 = vmatpush1.msra.mxu0 %v827
    %997 = vmatprep.subr.mxu0 %v830
    %998 = vmatpush1.msra.mxu0 %v829
    %999 = vmatprep.subr.mxu0 %v832
    %1000 = vmatpush1.msra.mxu0 %v831
    %1001 = vmatprep.subr.mxu0 %v834
    %1002 = vmatpush1.msra.mxu0 %v833
    %1003 = vmatprep.subr.mxu0 %v836
    %1004 = vmatpush1.msra.mxu0 %v835
    %1005 = vmatprep.subr.mxu0 %v838
    %1006 = vmatpush1.msra.mxu0 %v837
    %1007 = vmatprep.subr.mxu0 %v840
    %1008 = vmatpush1.msra.mxu0 %v839
    %1009 = vmatprep.subr.mxu0 %v842
    %1010 = vmatpush1.msra.mxu0 %v841
    %1011 = vmatprep.subr.mxu0 %v844
    %1012 = vmatpush1.msra.mxu0 %v843
    %1013 = vmatprep.subr.mxu0 %v846
    %1014 = vmatpush1.msra.mxu0 %v845
    %1015 = vmatprep.subr.mxu0 %v848
    %1016 = vmatpush1.msra.mxu0 %v847
    %1017 = vmatprep.mubr.f32.mxu0 %v866
    %1018 = vmatmul.mubr.f32.gmra.mrb[0].mxu0 %v862
    %v1019 = vpop.f32.mrb[0].mxu0
    %v1020 = vadd.f32 %v949, %v1019
    %v1021 = vpop.f32.mrb[0].mxu0
    %v1022 = vadd.f32 %v951, %v1021
    %1023 = vdwg.mxu0
    %v1024 = vmax.f32 %v1020, 0.0
    %v1025 = vmax.f32 %v1022, 0.0
    %v1026 = vlaneseq
    %v1027 = vshrl.u32 %v1026, 7
    %v1028 = vsub.s32 0, %v1027
    %v1029 = vrot.slane %v1024, %v1028
    %v1030 = vlaneseq
    %v1031 = vshrl.u32 %v1030, 7
    %v1032 = vsub.s32 0, %v1031
    %v1033 = vrot.slane %v1025, %v1032
    %1034 = vst [vmem:[#allocation13] sm:$0xff] %v1029
    %1035 = vst [vmem:[#allocation13 + $0x8] sm:$0xff] %v1033
    %1036 = vst [vmem:[#allocation13 + $0x10] sm:$0xf] %v1029
    %1037 = vst [vmem:[#allocation13 + $0x18] sm:$0xf] %v1033
    // Predicated region
    $region54: #{feature_converter_forward.1} parent=1 // pred_check
      _
    $region55: #{feature_converter_forward.1} parent=1 // pred_check_branch
      %1039 = sbr.rel (0) target = $region57
    $region56: #{feature_converter_forward.1} parent=1 // pred_region
      %s1041 = ssub.s32 512, 512
      %1042 = vsyncadd [#allocation4], %s1041
      %s1043 = sshll.u32 [#allocation10], 4
      %s1044 = int_to_ptr.vmem [resolvable:$true] %s1043
      %1049 = dma.vmem_to_hbm [thread:$0]  %s1044, 512, %s9, [#allocation4], 256, 256, 16
    $region57: #{feature_converter_forward.1} parent=1 // pred_fallthru
      _
    // Predicated region
    $region58: #{feature_converter_forward.1} parent=1 // pred_check
      _
    $region59: #{feature_converter_forward.1} parent=1 // pred_check_branch
      %1051 = sbr.rel (0) target = $region61
    $region60: #{feature_converter_forward.1} parent=1 // pred_region
      %s1053 = ssub.s32 512, 512
      %1054 = vsyncadd [#allocation12], %s1053
      %s1055 = sshll.u32 [#allocation11], 4
      %s1056 = int_to_ptr.vmem [resolvable:$true] %s1055
      %1061 = dma.vmem_to_hbm [thread:$0]  %s1056, 512, %s10, [#allocation12], 256, 256, 16
    $region61: #{feature_converter_forward.1} parent=1 // pred_fallthru
      _
    // Predicated region
    $region62: #{feature_converter_forward.1} parent=1 // pred_check
      _
    $region63: #{feature_converter_forward.1} parent=1 // pred_check_branch
      %1063 = sbr.rel (0) target = $region65
    $region64: #{feature_converter_forward.1} parent=1 // pred_region
      %s1065 = ssub.s32 512, 512
      %1066 = vsyncadd [#allocation12], %s1065
      %s1067 = sshll.u32 [#allocation13], 4
      %s1068 = int_to_ptr.vmem [resolvable:$true] %s1067
      %1073 = dma.vmem_to_hbm [thread:$0]  %s1068, 512, %s11, [#allocation12], 256, 256, 16
    $region65: #{feature_converter_forward.1} parent=1 // pred_fallthru
      _
    // Predicated region
    $region66: #{feature_converter_forward.1} parent=1 // pred_check
      _
    $region67: #{feature_converter_forward.1} parent=1 // pred_check_branch
      %1075 = sbr.rel (0) target = $region69
    $region68: #{feature_converter_forward.1} parent=1 // pred_region
      %1076 = dma.done [#allocation4], 512
    $region69: #{feature_converter_forward.1} parent=1 // pred_fallthru
      _
    // Predicated region
    $region70: #{feature_converter_forward.1} parent=1 // pred_check
      _
    $region71: #{feature_converter_forward.1} parent=1 // pred_check_branch
      %1078 = sbr.rel (0) target = $region73
    $region72: #{feature_converter_forward.1} parent=1 // pred_region
      %1079 = dma.done [#allocation12], 512
    $region73: #{feature_converter_forward.1} parent=1 // pred_fallthru
      _
    // Predicated region
    $region74: #{feature_converter_forward.1} parent=1 // pred_check
      _
    $region75: #{feature_converter_forward.1} parent=1 // pred_check_branch
      %1081 = sbr.rel (0) target = $region77
    $region76: #{feature_converter_forward.1} parent=1 // pred_region
      %1082 = dma.done [#allocation12], 512
    $region77: #{feature_converter_forward.1} parent=1 // pred_fallthru
      _
    %1083 = vsyncpa [#allocation3], 1
    %1084 = vsyncpa [#allocation6], 1
    %1085 = vsyncpa [#allocation9], 1
    %1086 = vsyncpa [#allocation4], 1
    %1087 = vsyncpa [#allocation12], 1

</llo_original>
